<compile_context>
chip_gen: v7x
topology: tpu7x:2x2x1
jax: 0.10.0
libtpu: 0.0.40
codegen_flags: <defaults>
</compile_context>

<pallas_src>
import functools

import jax
import jax.numpy as jnp
from jax.experimental import pallas as pl
from jax.experimental.pallas import tpu as pltpu


# ---------------------------------------------------------------------------
# 1) Node projection kernel: Q/K/V computed ONCE per node tile.
# ---------------------------------------------------------------------------
def _node_proj_kernel(h_ref, wq_ref, bq_ref, wk_ref, bk_ref, wv_ref, bv_ref,
                      q_ref, k_ref, v_ref):
    f32 = jnp.float32
    h = h_ref[...]                                   # (Tn, Din), native dtype
    # Three separate matmuls keep lane slicing trivially aligned for any HD;
    # fuse into a single (Din, 3*HD) matmul when HD % 128 == 0 in production.
    for w_ref, b_ref, o_ref in ((wq_ref, bq_ref, q_ref),
                                (wk_ref, bk_ref, k_ref),
                                (wv_ref, bv_ref, v_ref)):
        o_ref[...] = (jnp.dot(h, w_ref[...], preferred_element_type=f32)
                      + b_ref[...].astype(f32)).astype(o_ref.dtype)


# ---------------------------------------------------------------------------
# 2) Attention + edge-feature kernel over a (dst tile, src tile) grid.
# ---------------------------------------------------------------------------
def _graph_attn_kernel(
    q_ref,      # (Td, HD)        dst Q tile
    k_ref,      # (Ts, HD)        src K tile
    v_ref,      # (Ts, HD)        src V tile
    e_ref,      # (Td, Ts, Din)   edge-feature tile, [dst, src]
    adj_ref,    # (Td, Ts, 1)     adjacency mask tile
    we_ref,     # (Din, HD)       proj_e weight (grid-invariant)
    be_ref,     # (1, HD)         proj_e bias
    red_ref,    # (HD, H)         per-head reduce matrix (1 iff same head)
    exd_ref,    # (H, HD)         per-head expand matrix
    hout_ref,   # (Td, HD)        output node features (written on last src step)
    eout_ref,   # (Td, Ts, HD)    output edge features
    wv_acc,     # VMEM (Td, HD) f32   accumulator over src tiles
    z_acc,      # VMEM (Td, H)  f32   accumulator over src tiles
    *,
    head_dim: int,
):
    f32 = jnp.float32
    s_id = pl.program_id(1)

    @pl.when(s_id == 0)
    def _():
        wv_acc[...] = jnp.zeros_like(wv_acc)
        z_acc[...] = jnp.zeros_like(z_acc)

    q = q_ref[...].astype(f32)                       # (Td, HD)
    k = k_ref[...].astype(f32)                       # (Ts, HD)
    v = v_ref[...].astype(f32)                       # (Ts, HD)
    adj = adj_ref[...].astype(f32)                   # (Td, Ts, 1)
    red = red_ref[...].astype(f32)                   # (HD, H)
    exd = exd_ref[...].astype(f32)                   # (H, HD)
    Td, HD = q.shape
    Ts = k.shape[0]
    H = red.shape[1]

    # --- edge projection (dominant MXU matmul, once per edge tile) ---
    ef = e_ref[...].reshape(Td * Ts, -1)
    pe = (jnp.dot(ef, we_ref[...], preferred_element_type=f32)
          + be_ref[...].astype(f32))                 # (Td*Ts, HD) f32

    # --- per-head <K_src, Q_dst>: expanded-lane product + (HD,H) reduce matmul ---
    prod = (q[:, None, :] * k[None, :, :]).reshape(Td * Ts, HD)
    scale = 1.0 / float(head_dim) ** 0.5
    score_h = jnp.dot(prod, red, preferred_element_type=f32) * scale   # (Td*Ts, H)

    # --- e_out = score (broadcast over head width via expand matmul) * proj_e ---
    score_hd = jnp.dot(score_h, exd, preferred_element_type=f32)       # (Td*Ts, HD)
    e_out = score_hd * pe
    eout_ref[...] = e_out.reshape(Td, Ts, HD).astype(eout_ref.dtype)

    # --- attention weight: clip/exp on the COMPACT per-head tensor ---
    inner_h = jnp.dot(e_out, red, preferred_element_type=f32)          # (Td*Ts, H)
    att = jnp.exp(jnp.clip(inner_h, -5.0, 5.0)).reshape(Td, Ts, H)
    att = att * adj                                                    # mask

    # --- accumulate z and wV over source tiles ---
    z_acc[...] += jnp.sum(att, axis=1)                                 # (Td, H)
    att_hd = jnp.dot(att.reshape(Td * Ts, H), exd,
                     preferred_element_type=f32).reshape(Td, Ts, HD)
    # TODO(synk): if profiling at production N shows VALU saturation, move this
    # src-contraction onto the MXU as a per-head batched dot_general.
    wv_acc[...] += jnp.sum(att_hd * v[None, :, :], axis=1)             # (Td, HD)

    # --- finalize on the last src step ---
    @pl.when(s_id == pl.num_programs(1) - 1)
    def _():
        z_hd = jnp.dot(z_acc[...], exd, preferred_element_type=f32)    # (Td, HD)
        hout_ref[...] = (wv_acc[...] / (z_hd + 1e-6)).astype(hout_ref.dtype)


# ---------------------------------------------------------------------------
# Wrapper
# ---------------------------------------------------------------------------
def graph_mha(h, e, adj, params, *, num_heads, out_dim,
              dst_tile=64, src_tile=128, node_tile=128):
    """h: (N, Din); e: (N, N, Din) with e[dst, src]; adj: (N, N) mask."""
    N, Din = h.shape
    HD = num_heads * out_dim
    wq, bq, wk, bk, wv, bv, we, be = params

    Td = min(dst_tile, N)
    Ts = min(src_tile, N)
    Tn = min(node_tile, N)
    assert N % Td == 0 and N % Ts == 0 and N % Tn == 0
    assert Td % 8 == 0 and Ts % 8 == 0 and Tn % 8 == 0

    bq2 = bq.reshape(1, HD)
    bk2 = bk.reshape(1, HD)
    bv2 = bv.reshape(1, HD)
    be2 = be.reshape(1, HD)

    # Grid-invariant weights: constant index_map, so Pallas does not re-fetch
    # them between steps.  (At production Din/HD, also mark them
    # pipeline_mode=pl.Buffered(1) to drop the default double buffer.)
    def const1(shape):
        return pl.BlockSpec(shape, lambda i: (0,) * len(shape))

    def const2(shape):
        return pl.BlockSpec(shape, lambda i, s: (0,) * len(shape))

    # --- 1) node projections (Q/K/V), hoisted out of the attention grid ---
    qh, kh, vh = pl.pallas_call(
        _node_proj_kernel,
        out_shape=tuple(jax.ShapeDtypeStruct((N, HD), h.dtype) for _ in range(3)),
        grid_spec=pltpu.PrefetchScalarGridSpec(
            num_scalar_prefetch=0,
            grid=(N // Tn,),
            in_specs=[
                pl.BlockSpec((Tn, Din), lambda i: (i, 0)),
                const1((Din, HD)), const1((1, HD)),
                const1((Din, HD)), const1((1, HD)),
                const1((Din, HD)), const1((1, HD)),
            ],
            out_specs=[pl.BlockSpec((Tn, HD), lambda i: (i, 0)) for _ in range(3)],
        ),
        compiler_params=pltpu.CompilerParams(
            dimension_semantics=("parallel",),
        ),
    )(h, wq, bq2, wk, bk2, wv, bv2)

    # --- 2) constant head reduce / expand matrices (built once, host side) ---
    head_of_col = jnp.arange(HD, dtype=jnp.int32) // out_dim
    red = (head_of_col[:, None] ==
           jnp.arange(num_heads, dtype=jnp.int32)[None, :]).astype(h.dtype)   # (HD, H)
    exd = jnp.transpose(red)                                                  # (H, HD)

    # Adjacency carried with a trailing singleton dim so any Ts (multiple of 8)
    # tiles legally.  At production tiles (Ts % 128 == 0) pass a 2-D (Td, Ts)
    # mask block instead to avoid the 128x lane padding of this buffer.
    adj3 = adj.reshape(N, N, 1).astype(h.dtype)

    kernel = functools.partial(_graph_attn_kernel, head_dim=out_dim)

    grid_spec = pltpu.PrefetchScalarGridSpec(
        num_scalar_prefetch=0,
        grid=(N // Td, N // Ts),                 # dst (parallel), src (reduction)
        in_specs=[
            pl.BlockSpec((Td, HD), lambda i, s: (i, 0)),          # Q dst tile
            pl.BlockSpec((Ts, HD), lambda i, s: (s, 0)),          # K src tile
            pl.BlockSpec((Ts, HD), lambda i, s: (s, 0)),          # V src tile
            pl.BlockSpec((Td, Ts, Din), lambda i, s: (i, s, 0)),  # edge tile
            pl.BlockSpec((Td, Ts, 1), lambda i, s: (i, s, 0)),    # adjacency tile
            const2((Din, HD)), const2((1, HD)),                   # we, be
            const2((HD, num_heads)), const2((num_heads, HD)),     # reduce, expand
        ],
        out_specs=[
            pl.BlockSpec((Td, HD), lambda i, s: (i, 0)),          # h_out (resident)
            pl.BlockSpec((Td, Ts, HD), lambda i, s: (i, s, 0)),   # e_out
        ],
        scratch_shapes=[
            pltpu.VMEM((Td, HD), jnp.float32),                    # wV accumulator
            pltpu.VMEM((Td, num_heads), jnp.float32),             # z accumulator
        ],
    )

    h_out, e_out = pl.pallas_call(
        kernel,
        out_shape=(
            jax.ShapeDtypeStruct((N, HD), h.dtype),
            jax.ShapeDtypeStruct((N, N, HD), h.dtype),
        ),
        grid_spec=grid_spec,
        compiler_params=pltpu.CompilerParams(
            dimension_semantics=("parallel", "arbitrary"),
            vmem_limit_bytes=32 * 1024 * 1024,
        ),
    )(qh, kh, vh, e, adj3, we, be2, red, exd)

    return h_out, e_out


# ---------------------------------------------------------------------------
# Pure-JAX reference mirroring the PyTorch/DGL forward (dense graph).
# ---------------------------------------------------------------------------
def _reference(h, e, adj, params, *, num_heads, out_dim):
    wq, bq, wk, bk, wv, bv, we, be = params
    N, Din = h.shape
    HD = num_heads * out_dim
    Q = (h @ wq + bq).reshape(N, num_heads, out_dim)
    K = (h @ wk + bk).reshape(N, num_heads, out_dim)
    V = (h @ wv + bv).reshape(N, num_heads, out_dim)
    PE = (e.reshape(N * N, Din) @ we + be).reshape(N, N, num_heads, out_dim)

    score = jnp.einsum("jhd,ihd->ijh", K, Q) / (out_dim ** 0.5)   # (dst, src, H)
    e_out = score[..., None] * PE                                 # (N, N, H, d)
    att = jnp.exp(jnp.clip(jnp.sum(e_out, axis=-1), -5.0, 5.0))   # (N, N, H)
    att = att * adj[..., None]
    wV = jnp.einsum("ijh,jhd->ihd", att, V)
    z = jnp.sum(att, axis=1)                                      # (N, H)
    h_out = wV / (z[..., None] + 1e-6)
    return h_out.reshape(N, HD), e_out.reshape(N, N, HD)


if __name__ == "__main__":
    # Small config: 64 nodes, in_dim=32, 8 heads x out_dim=16 (HD=128, lane-dense),
    # use_bias=True.  Tiles 32x32 -> grid (2, 2): exercises both the parallel dst
    # axis and the src accumulation (init / finalize) path.
    N, Din, H, d = 64, 32, 8, 16
    HD = H * d

    key = jax.random.PRNGKey(0)
    ks = jax.random.split(key, 10)

    def w(k, shape, scale=0.05):
        return (scale * jax.random.normal(k, shape)).astype(jnp.float32)

    h = w(ks[0], (N, Din), 1.0)
    e = w(ks[1], (N, N, Din), 1.0)
    # deterministic banded adjacency (every node keeps some in-edges)
    ii = jnp.arange(N)
    adj = (jnp.abs(ii[:, None] - ii[None, :]) <= 9).astype(jnp.float32)

    params = (
        w(ks[2], (Din, HD)), w(ks[3], (HD,)),   # Q
        w(ks[4], (Din, HD)), w(ks[5], (HD,)),   # K
        w(ks[6], (Din, HD)), w(ks[7], (HD,)),   # V
        w(ks[8], (Din, HD)), w(ks[9], (HD,)),   # proj_e
    )

    h_out, e_out = graph_mha(h, e, adj, params, num_heads=H, out_dim=d,
                             dst_tile=32, src_tile=32, node_tile=32)
    h_out, e_out = jax.block_until_ready((h_out, e_out))

    h_ref, e_ref = _reference(h, e, adj, params, num_heads=H, out_dim=d)
    assert h_out.shape == (N, HD) and e_out.shape == (N, N, HD)
    assert jnp.allclose(h_out, h_ref, atol=2e-3, rtol=2e-3), (
        f"h_out max err {jnp.max(jnp.abs(h_out - h_ref))}")
    assert jnp.allclose(e_out, e_ref, atol=2e-3, rtol=2e-3), (
        f"e_out max err {jnp.max(jnp.abs(e_out - e_ref))}")
    print("KERNEL_OK")
</pallas_src>

<mosaic_0001>
module attributes {stable_mosaic.version = 11 : i64} {
  func.func @_node_proj_kernel(%arg0: i32, %arg1: memref<32x32xf32, #tpu.memory_space<vmem>>, %arg2: memref<32x128xf32, #tpu.memory_space<vmem>>, %arg3: memref<1x128xf32, #tpu.memory_space<vmem>>, %arg4: memref<32x128xf32, #tpu.memory_space<vmem>>, %arg5: memref<1x128xf32, #tpu.memory_space<vmem>>, %arg6: memref<32x128xf32, #tpu.memory_space<vmem>>, %arg7: memref<1x128xf32, #tpu.memory_space<vmem>>, %arg8: memref<32x128xf32, #tpu.memory_space<vmem>>, %arg9: memref<32x128xf32, #tpu.memory_space<vmem>>, %arg10: memref<32x128xf32, #tpu.memory_space<vmem>>) attributes {dimension_semantics = [#tpu.dimension_semantics<parallel>], iteration_bounds = array<i64: 2>, scalar_prefetch = 0 : i64, scratch_operands = 0 : i64, tpu.core_type = #tpu.core_type<tc>, window_params = [{transform_indices = @transform_0, window_bounds = array<i64: 32, 32>}, {pipeline_mode = #tpu.pipeline_mode<synchronous>, transform_indices = @transform_1, window_bounds = array<i64: 32, 128>}, {pipeline_mode = #tpu.pipeline_mode<synchronous>, transform_indices = @transform_2, window_bounds = array<i64: 1, 128>}, {pipeline_mode = #tpu.pipeline_mode<synchronous>, transform_indices = @transform_3, window_bounds = array<i64: 32, 128>}, {pipeline_mode = #tpu.pipeline_mode<synchronous>, transform_indices = @transform_4, window_bounds = array<i64: 1, 128>}, {pipeline_mode = #tpu.pipeline_mode<synchronous>, transform_indices = @transform_5, window_bounds = array<i64: 32, 128>}, {pipeline_mode = #tpu.pipeline_mode<synchronous>, transform_indices = @transform_6, window_bounds = array<i64: 1, 128>}, {transform_indices = @transform_7, window_bounds = array<i64: 32, 128>}, {transform_indices = @transform_8, window_bounds = array<i64: 32, 128>}, {transform_indices = @transform_9, window_bounds = array<i64: 32, 128>}]} {
    %c0 = arith.constant 0 : index
    %c0_0 = arith.constant 0 : index
    %0 = vector.load %arg1[%c0, %c0_0] : memref<32x32xf32, #tpu.memory_space<vmem>>, vector<32x32xf32>
    %c0_1 = arith.constant 0 : index
    %c0_2 = arith.constant 0 : index
    %1 = vector.load %arg2[%c0_1, %c0_2] : memref<32x128xf32, #tpu.memory_space<vmem>>, vector<32x128xf32>
    %cst = arith.constant dense<0.000000e+00> : vector<32x128xf32>
    %2 = tpu.matmul %0, %1, %cst {dimension_numbers = #tpu.dot_dimension_numbers<[1], [0], [0], [1], [0, 0, 1, 1], [], []>} : vector<32x32xf32>, vector<32x128xf32>, vector<32x128xf32> -> vector<32x128xf32>
    %c0_3 = arith.constant 0 : index
    %c0_4 = arith.constant 0 : index
    %3 = vector.load %arg3[%c0_3, %c0_4] : memref<1x128xf32, #tpu.memory_space<vmem>>, vector<1x128xf32>
    %4 = vector.broadcast %3 : vector<1x128xf32> to vector<32x128xf32>
    %5 = arith.addf %2, %4 : vector<32x128xf32>
    %c0_5 = arith.constant 0 : index
    %c0_6 = arith.constant 0 : index
    %6 = vector.load %arg8[%c0_5, %c0_6] : memref<32x128xf32, #tpu.memory_space<vmem>>, vector<32x128xf32>
    tpu.vector_store %arg8[%c0_5, %c0_6], %5 {strides = array<i32>} : memref<32x128xf32, #tpu.memory_space<vmem>>, vector<32x128xf32>,
    %c0_7 = arith.constant 0 : index
    %c0_8 = arith.constant 0 : index
    %7 = vector.load %arg4[%c0_7, %c0_8] : memref<32x128xf32, #tpu.memory_space<vmem>>, vector<32x128xf32>
    %cst_9 = arith.constant dense<0.000000e+00> : vector<32x128xf32>
    %8 = tpu.matmul %0, %7, %cst_9 {dimension_numbers = #tpu.dot_dimension_numbers<[1], [0], [0], [1], [0, 0, 1, 1], [], []>} : vector<32x32xf32>, vector<32x128xf32>, vector<32x128xf32> -> vector<32x128xf32>
    %c0_10 = arith.constant 0 : index
    %c0_11 = arith.constant 0 : index
    %9 = vector.load %arg5[%c0_10, %c0_11] : memref<1x128xf32, #tpu.memory_space<vmem>>, vector<1x128xf32>
    %10 = vector.broadcast %9 : vector<1x128xf32> to vector<32x128xf32>
    %11 = arith.addf %8, %10 : vector<32x128xf32>
    %c0_12 = arith.constant 0 : index
    %c0_13 = arith.constant 0 : index
    %12 = vector.load %arg9[%c0_12, %c0_13] : memref<32x128xf32, #tpu.memory_space<vmem>>, vector<32x128xf32>
    tpu.vector_store %arg9[%c0_12, %c0_13], %11 {strides = array<i32>} : memref<32x128xf32, #tpu.memory_space<vmem>>, vector<32x128xf32>,
    %c0_14 = arith.constant 0 : index
    %c0_15 = arith.constant 0 : index
    %13 = vector.load %arg6[%c0_14, %c0_15] : memref<32x128xf32, #tpu.memory_space<vmem>>, vector<32x128xf32>
    %cst_16 = arith.constant dense<0.000000e+00> : vector<32x128xf32>
    %14 = tpu.matmul %0, %13, %cst_16 {dimension_numbers = #tpu.dot_dimension_numbers<[1], [0], [0], [1], [0, 0, 1, 1], [], []>} : vector<32x32xf32>, vector<32x128xf32>, vector<32x128xf32> -> vector<32x128xf32>
    %c0_17 = arith.constant 0 : index
    %c0_18 = arith.constant 0 : index
    %15 = vector.load %arg7[%c0_17, %c0_18] : memref<1x128xf32, #tpu.memory_space<vmem>>, vector<1x128xf32>
    %16 = vector.broadcast %15 : vector<1x128xf32> to vector<32x128xf32>
    %17 = arith.addf %14, %16 : vector<32x128xf32>
    %c0_19 = arith.constant 0 : index
    %c0_20 = arith.constant 0 : index
    %18 = vector.load %arg10[%c0_19, %c0_20] : memref<32x128xf32, #tpu.memory_space<vmem>>, vector<32x128xf32>
    tpu.vector_store %arg10[%c0_19, %c0_20], %17 {strides = array<i32>} : memref<32x128xf32, #tpu.memory_space<vmem>>, vector<32x128xf32>,
    return
  }
  func.func @transform_0(%arg0: i32) -> (i32, i32) {
    %c0_i32 = arith.constant 0 : i32
    %c0_i32_0 = arith.constant 0 : i32
    return %arg0, %c0_i32 : i32, i32
  }
  func.func @transform_1(%arg0: i32) -> (i32, i32) {
    %c0_i32 = arith.constant 0 : i32
    %c0_i32_0 = arith.constant 0 : i32
    %c0_i32_1 = arith.constant 0 : i32
    return %c0_i32, %c0_i32_0 : i32, i32
  }
  func.func @transform_2(%arg0: i32) -> (i32, i32) {
    %c0_i32 = arith.constant 0 : i32
    %c0_i32_0 = arith.constant 0 : i32
    %c0_i32_1 = arith.constant 0 : i32
    return %c0_i32, %c0_i32_0 : i32, i32
  }
  func.func @transform_3(%arg0: i32) -> (i32, i32) {
    %c0_i32 = arith.constant 0 : i32
    %c0_i32_0 = arith.constant 0 : i32
    %c0_i32_1 = arith.constant 0 : i32
    return %c0_i32, %c0_i32_0 : i32, i32
  }
  func.func @transform_4(%arg0: i32) -> (i32, i32) {
    %c0_i32 = arith.constant 0 : i32
    %c0_i32_0 = arith.constant 0 : i32
    %c0_i32_1 = arith.constant 0 : i32
    return %c0_i32, %c0_i32_0 : i32, i32
  }
  func.func @transform_5(%arg0: i32) -> (i32, i32) {
    %c0_i32 = arith.constant 0 : i32
    %c0_i32_0 = arith.constant 0 : i32
    %c0_i32_1 = arith.constant 0 : i32
    return %c0_i32, %c0_i32_0 : i32, i32
  }
  func.func @transform_6(%arg0: i32) -> (i32, i32) {
    %c0_i32 = arith.constant 0 : i32
    %c0_i32_0 = arith.constant 0 : i32
    %c0_i32_1 = arith.constant 0 : i32
    return %c0_i32, %c0_i32_0 : i32, i32
  }
  func.func @transform_7(%arg0: i32) -> (i32, i32) {
    %c0_i32 = arith.constant 0 : i32
    %c0_i32_0 = arith.constant 0 : i32
    return %arg0, %c0_i32 : i32, i32
  }
  func.func @transform_8(%arg0: i32) -> (i32, i32) {
    %c0_i32 = arith.constant 0 : i32
    %c0_i32_0 = arith.constant 0 : i32
    return %arg0, %c0_i32 : i32, i32
  }
  func.func @transform_9(%arg0: i32) -> (i32, i32) {
    %c0_i32 = arith.constant 0 : i32
    %c0_i32_0 = arith.constant 0 : i32
    return %arg0, %c0_i32 : i32, i32
  }
}

</mosaic_0001>

<llo_original>
// kernel: tpu_custom_call.1
$region0: #{tpu_custom_call.1}
  #allocation0 [shape = 'u32[]', space=smem, size = 0x4, offset = 0x4, fixed_abs, tag = 'smem constant byte address 0x4 - core index']
  #allocation1 [shape = 'u32[144,128]{1,0:T(1,128)}', space=vmem, size = 0x12000, scoped, tag = 'internal scratch']
  %s0 = inlined_call_operand.vmem [shape: f32[64,32], index: 0, kind: input, shape index: {}]
  %s1 = inlined_call_operand.vmem [shape: f32[32,128], index: 1, kind: input, shape index: {}]
  %s2 = inlined_call_operand.vmem [shape: f32[1,128], index: 2, kind: input, shape index: {}]
  %s3 = inlined_call_operand.vmem [shape: f32[32,128], index: 3, kind: input, shape index: {}]
  %s4 = inlined_call_operand.vmem [shape: f32[1,128], index: 4, kind: input, shape index: {}]
  %s5 = inlined_call_operand.vmem [shape: f32[32,128], index: 5, kind: input, shape index: {}]
  %s6 = inlined_call_operand.vmem [shape: f32[1,128], index: 6, kind: input, shape index: {}]
  %s7 = inlined_call_operand.hbm [shape: f32[64,128], index: 7, kind: output, shape index: {0}]
  %s8 = inlined_call_operand.hbm [shape: f32[64,128], index: 8, kind: output, shape index: {1}]
  %s9 = inlined_call_operand.hbm [shape: f32[64,128], index: 9, kind: output, shape index: {2}]
  %10 = xla_tuple %s7, %s8, %s9
  %s11 = sld [smem:[#allocation0]]
  $region77: #{tpu_custom_call.1} parent=0
    _
  %s13 = ssub.s32 1, %s11
  %s14 = scalar_select 0, %s13, %s11
  $region1: #{tpu_custom_call.1} parent=0
    #allocation2 [shape = 'u8[32768]{0}', space=vmem, size = 0x8000, scoped, tag = 'output window, operand 0']
    #allocation3 [shape = 's32[2]{0}', space=sflag, size = 0x8, scoped, tag = 'scoped memory for tpu_custom_call.1']
    #allocation4 [shape = 'u8[32768]{0}', space=vmem, size = 0x8000, scoped, tag = 'output window, operand 1']
    #allocation5 [shape = 's32[2]{0}', space=sflag, size = 0x8, scoped, tag = 'scoped memory for tpu_custom_call.1']
    #allocation6 [shape = 'u8[32768]{0}', space=vmem, size = 0x8000, scoped, tag = 'output window, operand 2']
    %15 = vsyncpa [#allocation3], 0
    %s16 = scalar_lea.sflag [#allocation3], 1
    %17 = vsyncpa %s16, 0
    %18 = vsyncpa [#allocation5], 0
    %s19 = scalar_lea.sflag [#allocation5], 1
    %20 = vsyncpa %s19, 0
    loop: start=0, step=1, limit=4
    $region2: #{tpu_custom_call.1} parent=1 // loop_pre_header
      _
    $region3: #{tpu_custom_call.1} parent=1 // loop_header
      %s22 = sphi 0, %s26
      %p23 = scmp.ge.s32.totalorder %s22, 4
      %s32 = sphi 0, %s34
      %s35 = sphi 0, %s32
      %s36 = sphi 0, %s35
      %s52 = sphi 0, %s36
      %s56 = sphi 0, %s56
      %s58 = sphi 0, %s56
      %s59 = sphi 0, %s58
      %s73 = sphi 0, %s59
      %s77 = sphi 0, %s77
      %s79 = sphi 0, %s77
      %s80 = sphi 0, %s79
      %s94 = sphi 0, %s80
      %s98 = sphi 0, %s98
      %s100 = sphi 0, %s98
      %s101 = sphi 0, %s100
      %s115 = sphi 0, %s101
      %s119 = sphi 0, %s119
      %s121 = sphi 0, %s119
      %s122 = sphi 0, %s121
      %s136 = sphi 0, %s122
      %s140 = sphi 0, %s140
      %s142 = sphi 0, %s140
      %s143 = sphi 0, %s142
      %s157 = sphi 0, %s143
      %s161 = sphi 0, %s161
      %s163 = sphi 0, %s161
      %s164 = sphi 0, %s163
      %s178 = sphi 0, %s164
      %s184 = sphi 0, %s186
      %s187 = sphi 0, %s184
      %s188 = sphi 0, %s187
      %s204 = sphi 0, %s188
      %s210 = sphi 0, %s212
      %s213 = sphi 0, %s210
      %s214 = sphi 0, %s213
      %s230 = sphi 0, %s214
      %s236 = sphi 0, %s238
      %s239 = sphi 0, %s236
      %s240 = sphi 0, %s239
      %s256 = sphi 0, %s240
    $region4: #{tpu_custom_call.1} parent=1 // loop_header_branch
      %25 = sbr.rel (%p23) target = $region8
    $region5: #{tpu_custom_call.1} parent=1 // loop_body
      %s27 = ssub.s32 %s22, 1
      %s28 = ssub.s32 %s22, 2
      %s29 = sadd.s32 %s22, 1
      %s30 = ssub.s32 %s22, %s29
      %p31 = scmp.eq.s32.totalorder %s30, 0
      %s33 = sadd.s32 %s32, 1
      %s34 = scalar_select %p31, %s32, %s33
      %p37 = pneg %p31
      %p38 = scmp.eq.s32.totalorder %s22, 1
      %p39 = por %p37, %p38
      %p40 = scmp.ne.s32.totalorder %s32, %s35
      %p41 = scmp.eq.s32.totalorder %s22, 0
      %p42 = por %p40, %p41
      %p43 = scmp.ne.s32.totalorder %s32, %s35
      %p44 = scmp.eq.s32.totalorder %s27, 1
      %p45 = por %p43, %p44
      %p46 = scmp.ne.s32.totalorder %s35, %s36
      %p47 = scmp.eq.s32.totalorder %s27, 0
      %p48 = por %p46, %p47
      %p49 = scmp.ne.s32.totalorder %s35, %s36
      %p50 = scmp.eq.s32.totalorder %s28, 1
      %p51 = por %p49, %p50
      %p53 = scmp.ne.s32.totalorder %s36, %s52
      %p54 = scmp.eq.s32.totalorder %s28, 0
      %p55 = por %p53, %p54
      %s57 = sadd.s32 %s56, 1
      %p60 = scmp.eq.s32.totalorder %s22, 1
      %p61 = scmp.ne.s32.totalorder %s56, %s58
      %p62 = scmp.eq.s32.totalorder %s22, 0
      %p63 = por %p61, %p62
      %p64 = scmp.ne.s32.totalorder %s56, %s58
      %p65 = scmp.eq.s32.totalorder %s27, 1
      %p66 = por %p64, %p65
      %p67 = scmp.ne.s32.totalorder %s58, %s59
      %p68 = scmp.eq.s32.totalorder %s27, 0
      %p69 = por %p67, %p68
      %p70 = scmp.ne.s32.totalorder %s58, %s59
      %p71 = scmp.eq.s32.totalorder %s28, 1
      %p72 = por %p70, %p71
      %p74 = scmp.ne.s32.totalorder %s59, %s73
      %p75 = scmp.eq.s32.totalorder %s28, 0
      %p76 = por %p74, %p75
      %s78 = sadd.s32 %s77, 1
      %p81 = scmp.eq.s32.totalorder %s22, 1
      %p82 = scmp.ne.s32.totalorder %s77, %s79
      %p83 = scmp.eq.s32.totalorder %s22, 0
      %p84 = por %p82, %p83
      %p85 = scmp.ne.s32.totalorder %s77, %s79
      %p86 = scmp.eq.s32.totalorder %s27, 1
      %p87 = por %p85, %p86
      %p88 = scmp.ne.s32.totalorder %s79, %s80
      %p89 = scmp.eq.s32.totalorder %s27, 0
      %p90 = por %p88, %p89
      %p91 = scmp.ne.s32.totalorder %s79, %s80
      %p92 = scmp.eq.s32.totalorder %s28, 1
      %p93 = por %p91, %p92
      %p95 = scmp.ne.s32.totalorder %s80, %s94
      %p96 = scmp.eq.s32.totalorder %s28, 0
      %p97 = por %p95, %p96
      %s99 = sadd.s32 %s98, 1
      %p102 = scmp.eq.s32.totalorder %s22, 1
      %p103 = scmp.ne.s32.totalorder %s98, %s100
      %p104 = scmp.eq.s32.totalorder %s22, 0
      %p105 = por %p103, %p104
      %p106 = scmp.ne.s32.totalorder %s98, %s100
      %p107 = scmp.eq.s32.totalorder %s27, 1
      %p108 = por %p106, %p107
      %p109 = scmp.ne.s32.totalorder %s100, %s101
      %p110 = scmp.eq.s32.totalorder %s27, 0
      %p111 = por %p109, %p110
      %p112 = scmp.ne.s32.totalorder %s100, %s101
      %p113 = scmp.eq.s32.totalorder %s28, 1
      %p114 = por %p112, %p113
      %p116 = scmp.ne.s32.totalorder %s101, %s115
      %p117 = scmp.eq.s32.totalorder %s28, 0
      %p118 = por %p116, %p117
      %s120 = sadd.s32 %s119, 1
      %p123 = scmp.eq.s32.totalorder %s22, 1
      %p124 = scmp.ne.s32.totalorder %s119, %s121
      %p125 = scmp.eq.s32.totalorder %s22, 0
      %p126 = por %p124, %p125
      %p127 = scmp.ne.s32.totalorder %s119, %s121
      %p128 = scmp.eq.s32.totalorder %s27, 1
      %p129 = por %p127, %p128
      %p130 = scmp.ne.s32.totalorder %s121, %s122
      %p131 = scmp.eq.s32.totalorder %s27, 0
      %p132 = por %p130, %p131
      %p133 = scmp.ne.s32.totalorder %s121, %s122
      %p134 = scmp.eq.s32.totalorder %s28, 1
      %p135 = por %p133, %p134
      %p137 = scmp.ne.s32.totalorder %s122, %s136
      %p138 = scmp.eq.s32.totalorder %s28, 0
      %p139 = por %p137, %p138
      %s141 = sadd.s32 %s140, 1
      %p144 = scmp.eq.s32.totalorder %s22, 1
      %p145 = scmp.ne.s32.totalorder %s140, %s142
      %p146 = scmp.eq.s32.totalorder %s22, 0
      %p147 = por %p145, %p146
      %p148 = scmp.ne.s32.totalorder %s140, %s142
      %p149 = scmp.eq.s32.totalorder %s27, 1
      %p150 = por %p148, %p149
      %p151 = scmp.ne.s32.totalorder %s142, %s143
      %p152 = scmp.eq.s32.totalorder %s27, 0
      %p153 = por %p151, %p152
      %p154 = scmp.ne.s32.totalorder %s142, %s143
      %p155 = scmp.eq.s32.totalorder %s28, 1
      %p156 = por %p154, %p155
      %p158 = scmp.ne.s32.totalorder %s143, %s157
      %p159 = scmp.eq.s32.totalorder %s28, 0
      %p160 = por %p158, %p159
      %s162 = sadd.s32 %s161, 1
      %p165 = scmp.eq.s32.totalorder %s22, 1
      %p166 = scmp.ne.s32.totalorder %s161, %s163
      %p167 = scmp.eq.s32.totalorder %s22, 0
      %p168 = por %p166, %p167
      %p169 = scmp.ne.s32.totalorder %s161, %s163
      %p170 = scmp.eq.s32.totalorder %s27, 1
      %p171 = por %p169, %p170
      %p172 = scmp.ne.s32.totalorder %s163, %s164
      %p173 = scmp.eq.s32.totalorder %s27, 0
      %p174 = por %p172, %p173
      %p175 = scmp.ne.s32.totalorder %s163, %s164
      %p176 = scmp.eq.s32.totalorder %s28, 1
      %p177 = por %p175, %p176
      %p179 = scmp.ne.s32.totalorder %s164, %s178
      %p180 = scmp.eq.s32.totalorder %s28, 0
      %p181 = por %p179, %p180
      %s182 = ssub.s32 %s22, %s29
      %p183 = scmp.eq.s32.totalorder %s182, 0
      %s185 = sadd.s32 %s184, 1
      %s186 = scalar_select %p183, %s184, %s185
      %p189 = pneg %p183
      %p190 = scmp.eq.s32.totalorder %s22, 1
      %p191 = por %p189, %p190
      %p192 = scmp.ne.s32.totalorder %s184, %s187
      %p193 = scmp.eq.s32.totalorder %s22, 0
      %p194 = por %p192, %p193
      %p195 = scmp.ne.s32.totalorder %s184, %s187
      %p196 = scmp.eq.s32.totalorder %s27, 1
      %p197 = por %p195, %p196
      %p198 = scmp.ne.s32.totalorder %s187, %s188
      %p199 = scmp.eq.s32.totalorder %s27, 0
      %p200 = por %p198, %p199
      %p201 = scmp.ne.s32.totalorder %s187, %s188
      %p202 = scmp.eq.s32.totalorder %s28, 1
      %p203 = por %p201, %p202
      %p205 = scmp.ne.s32.totalorder %s188, %s204
      %p206 = scmp.eq.s32.totalorder %s28, 0
      %p207 = por %p205, %p206
      %s208 = ssub.s32 %s22, %s29
      %p209 = scmp.eq.s32.totalorder %s208, 0
      %s211 = sadd.s32 %s210, 1
      %s212 = scalar_select %p209, %s210, %s211
      %p215 = pneg %p209
      %p216 = scmp.eq.s32.totalorder %s22, 1
      %p217 = por %p215, %p216
      %p218 = scmp.ne.s32.totalorder %s210, %s213
      %p219 = scmp.eq.s32.totalorder %s22, 0
      %p220 = por %p218, %p219
      %p221 = scmp.ne.s32.totalorder %s210, %s213
      %p222 = scmp.eq.s32.totalorder %s27, 1
      %p223 = por %p221, %p222
      %p224 = scmp.ne.s32.totalorder %s213, %s214
      %p225 = scmp.eq.s32.totalorder %s27, 0
      %p226 = por %p224, %p225
      %p227 = scmp.ne.s32.totalorder %s213, %s214
      %p228 = scmp.eq.s32.totalorder %s28, 1
      %p229 = por %p227, %p228
      %p231 = scmp.ne.s32.totalorder %s214, %s230
      %p232 = scmp.eq.s32.totalorder %s28, 0
      %p233 = por %p231, %p232
      %s234 = ssub.s32 %s22, %s29
      %p235 = scmp.eq.s32.totalorder %s234, 0
      %s237 = sadd.s32 %s236, 1
      %s238 = scalar_select %p235, %s236, %s237
      %p241 = pneg %p235
      %p242 = scmp.eq.s32.totalorder %s22, 1
      %p243 = por %p241, %p242
      %p244 = scmp.ne.s32.totalorder %s236, %s239
      %p245 = scmp.eq.s32.totalorder %s22, 0
      %p246 = por %p244, %p245
      %p247 = scmp.ne.s32.totalorder %s236, %s239
      %p248 = scmp.eq.s32.totalorder %s27, 1
      %p249 = por %p247, %p248
      %p250 = scmp.ne.s32.totalorder %s239, %s240
      %p251 = scmp.eq.s32.totalorder %s27, 0
      %p252 = por %p250, %p251
      %p253 = scmp.ne.s32.totalorder %s239, %s240
      %p254 = scmp.eq.s32.totalorder %s28, 1
      %p255 = por %p253, %p254
      %p257 = scmp.ne.s32.totalorder %s240, %s256
      %p258 = scmp.eq.s32.totalorder %s28, 0
      %p259 = por %p257, %p258
      %p260 = scmp.le.s32.totalorder 1, %s22
      %p261 = scmp.lt.s32.totalorder %s22, 3
      %p262 = pnand %p260, %p261
      %p263 = pneg %p262
      // Predicated region
      $region9: #{tpu_custom_call.1} parent=5 // pred_check
        _
      $region10: #{tpu_custom_call.1} parent=5 // pred_check_branch
        %265 = sbr.rel (%p262) target = $region12
      $region11: #{tpu_custom_call.1} parent=5 // pred_region
        %s266 = ssub.s32 %s22, 1
        // Predicated region
        $region13: #{tpu_custom_call.1} parent=11 // pred_check
          %p267 = pneg %p69
        $region14: #{tpu_custom_call.1} parent=11 // pred_check_branch
          %269 = sbr.rel (%p267) target = $region16
        $region15: #{tpu_custom_call.1} parent=11 // pred_region
          _
        $region16: #{tpu_custom_call.1} parent=11 // pred_fallthru
          _
        // Predicated region
        $region17: #{tpu_custom_call.1} parent=11 // pred_check
          %p270 = pneg %p90
        $region18: #{tpu_custom_call.1} parent=11 // pred_check_branch
          %272 = sbr.rel (%p270) target = $region20
        $region19: #{tpu_custom_call.1} parent=11 // pred_region
          _
        $region20: #{tpu_custom_call.1} parent=11 // pred_fallthru
          _
        // Predicated region
        $region21: #{tpu_custom_call.1} parent=11 // pred_check
          %p273 = pneg %p111
        $region22: #{tpu_custom_call.1} parent=11 // pred_check_branch
          %275 = sbr.rel (%p273) target = $region24
        $region23: #{tpu_custom_call.1} parent=11 // pred_region
          _
        $region24: #{tpu_custom_call.1} parent=11 // pred_fallthru
          _
        // Predicated region
        $region25: #{tpu_custom_call.1} parent=11 // pred_check
          %p276 = pneg %p132
        $region26: #{tpu_custom_call.1} parent=11 // pred_check_branch
          %278 = sbr.rel (%p276) target = $region28
        $region27: #{tpu_custom_call.1} parent=11 // pred_region
          _
        $region28: #{tpu_custom_call.1} parent=11 // pred_fallthru
          _
        // Predicated region
        $region29: #{tpu_custom_call.1} parent=11 // pred_check
          %p279 = pneg %p153
        $region30: #{tpu_custom_call.1} parent=11 // pred_check_branch
          %281 = sbr.rel (%p279) target = $region32
        $region31: #{tpu_custom_call.1} parent=11 // pred_region
          _
        $region32: #{tpu_custom_call.1} parent=11 // pred_fallthru
          _
        // Predicated region
        $region33: #{tpu_custom_call.1} parent=11 // pred_check
          %p282 = pneg %p174
        $region34: #{tpu_custom_call.1} parent=11 // pred_check_branch
          %284 = sbr.rel (%p282) target = $region36
        $region35: #{tpu_custom_call.1} parent=11 // pred_region
          _
        $region36: #{tpu_custom_call.1} parent=11 // pred_fallthru
          _
      $region12: #{tpu_custom_call.1} parent=5 // pred_fallthru
        _
      %p285 = scmp.lt.s32.totalorder %s22, 2
      // Predicated region
      $region37: #{tpu_custom_call.1} parent=5 // pred_check
        %p286 = pneg %p285
      $region38: #{tpu_custom_call.1} parent=5 // pred_check_branch
        %288 = sbr.rel (%p286) target = $region40
      $region39: #{tpu_custom_call.1} parent=5 // pred_region
        // Predicated region
        $region41: #{tpu_custom_call.1} parent=39 // pred_check
          %p289 = pneg %p42
        $region42: #{tpu_custom_call.1} parent=39 // pred_check_branch
          %291 = sbr.rel (%p289) target = $region44
        $region43: #{tpu_custom_call.1} parent=39 // pred_region
          %s292 = smul.u32 4, %s22
          %p293 = scmp.lt.s32.totalorder %s292, 7
          %s294 = scalar_select %p293, %s292, 7
          %s295 = smul.addr %s294, 8
          %s296 = scalar_lea.vmem %s0, %s295
          %s297 = smul.u32 4, %s22
        $region44: #{tpu_custom_call.1} parent=39 // pred_fallthru
          _
      $region40: #{tpu_custom_call.1} parent=5 // pred_fallthru
        _
      %p298 = scmp.le.s32.totalorder 1, %s22
      %p299 = scmp.lt.s32.totalorder %s22, 3
      %p300 = pnand %p298, %p299
      %p301 = pneg %p300
      // Predicated region
      $region45: #{tpu_custom_call.1} parent=5 // pred_check
        _
      $region46: #{tpu_custom_call.1} parent=5 // pred_check_branch
        %303 = sbr.rel (%p300) target = $region48
      $region47: #{tpu_custom_call.1} parent=5 // pred_region
        %s304 = ssub.s32 %s22, 1
        %s305 = smul.u32 4, %s27
        %p306 = scmp.lt.s32.totalorder %s305, 7
        %s307 = scalar_select %p306, %s305, 7
        %s308 = smul.addr %s307, 8
        %s309 = scalar_lea.vmem %s0, %s308
        %p310 = pneg %p48
        %p311 = pneg %p45
        %p312 = pneg %p69
        %p313 = pneg %p66
        %p314 = pneg %p90
        %p315 = pneg %p87
        %p316 = pneg %p111
        %p317 = pneg %p108
        %p318 = pneg %p132
        %p319 = pneg %p129
        %p320 = pneg %p153
        %p321 = pneg %p150
        %p322 = pneg %p174
        %p323 = pneg %p171
        %p324 = pneg %p200
        %p325 = pneg %p197
        %s326 = sand.u32 %s187, 1
        %s327 = scalar_lea.sflag [#allocation3], %s326
        %s328 = sand.u32 %s187, 1
        %s329 = smul.addr %s328, 32
        %s330 = scalar_lea.vmem [#allocation2], %s329
        %p331 = pneg %p226
        %p332 = pneg %p223
        %s333 = sand.u32 %s27, 1
        %s334 = scalar_lea.sflag [#allocation5], %s333
        %s335 = sand.u32 %s213, 1
        %s336 = smul.addr %s335, 32
        %s337 = scalar_lea.vmem [#allocation4], %s336
        %p338 = pneg %p252
        %p339 = pneg %p249
        %s340 = sand.u32 %s27, 1
        %s341 = scalar_lea.sflag [#allocation5], %s340
        %s342 = sand.u32 %s239, 1
        %s343 = smul.addr %s342, 32
        %s344 = scalar_lea.vmem [#allocation6], %s343
        %s345 = smul.u32 4, %s27
        %p346 = scmp.lt.s32.totalorder %s345, 7
        %s347 = scalar_select %p346, %s345, 7
        %s348 = smul.addr %s347, 8
        %s349 = scalar_lea.vmem %s0, %s348
        %s350 = smul.u32 4, %s27
        %s351 = smul.u32 4, %s27
        %s352 = smul.u32 4, %s27
        %s353 = smul.u32 4, %s27
        %v354 = vld [vmem:[%s349] sm:$0xff]
        %v355 = vld [vmem:[%s349 + $0x8] sm:$0xff]
        %v356 = vld [vmem:[%s349 + $0x10] sm:$0xff]
        %v357 = vld [vmem:[%s349 + $0x18] sm:$0xff]
        %v358 = vld [vmem:[%s1] sm:$0xff]
        %v359 = vld [vmem:[%s1 + $0x8] sm:$0xff]
        %v360 = vld [vmem:[%s1 + $0x10] sm:$0xff]
        %v361 = vld [vmem:[%s1 + $0x18] sm:$0xff]
        %v362 = vld [vmem:[%s2] sm:$0x1]
        %v364 = vlaneseq
        %v365 = vshrl.u32 %v364, 7
        %v366 = vsub.s32 0, %v365
        %v367 = vrot.slane %v362, %v366
        %vm369 = vcmask 261120
        %v371 = vsel %vm369, %v354, 0
        %v374 = vsel %vm369, %v355, 0
        %v377 = vsel %vm369, %v356, 0
        %v380 = vsel %vm369, %v357, 0
        %382 = vmatprep.subr.mxu0 0.0
        %383 = vmatpush1.msra.mxu0 %v358
        %384 = vmatprep.subr.mxu0 0.0
        %385 = vmatpush1.msra.mxu0 %v359
        %386 = vmatprep.subr.mxu0 0.0
        %387 = vmatpush1.msra.mxu0 %v360
        %388 = vmatprep.subr.mxu0 0.0
        %389 = vmatpush1.msra.mxu0 %v361
        %390 = vmatprep.subr.mxu0 0.0
        %391 = vmatpush1.msra.mxu0 0.0
        %392 = vmatprep.subr.mxu0 0.0
        %393 = vmatpush1.msra.mxu0 0.0
        %394 = vmatprep.subr.mxu0 0.0
        %395 = vmatpush1.msra.mxu0 0.0
        %396 = vmatprep.subr.mxu0 0.0
        %397 = vmatpush1.msra.mxu0 0.0
        %398 = vmatprep.subr.mxu0 0.0
        %399 = vmatpush1.msra.mxu0 0.0
        %400 = vmatprep.subr.mxu0 0.0
        %401 = vmatpush1.msra.mxu0 0.0
        %402 = vmatprep.subr.mxu0 0.0
        %403 = vmatpush1.msra.mxu0 0.0
        %404 = vmatprep.subr.mxu0 0.0
        %405 = vmatpush1.msra.mxu0 0.0
        %406 = vmatprep.subr.mxu0 0.0
        %407 = vmatpush1.msra.mxu0 0.0
        %408 = vmatprep.subr.mxu0 0.0
        %409 = vmatpush1.msra.mxu0 0.0
        %410 = vmatprep.subr.mxu0 0.0
        %411 = vmatpush1.msra.mxu0 0.0
        %412 = vmatprep.subr.mxu0 0.0
        %413 = vmatpush1.msra.mxu0 0.0
        %414 = vmatprep.subr.mxu0 0.0
        %415 = vmatpush1.msra.mxu0 0.0
        %416 = vmatprep.subr.mxu0 0.0
        %417 = vmatpush1.msra.mxu0 0.0
        %418 = vmatprep.subr.mxu0 0.0
        %419 = vmatpush1.msra.mxu0 0.0
        %420 = vmatprep.subr.mxu0 0.0
        %421 = vmatpush1.msra.mxu0 0.0
        %422 = vmatprep.subr.mxu0 0.0
        %423 = vmatpush1.msra.mxu0 0.0
        %424 = vmatprep.subr.mxu0 0.0
        %425 = vmatpush1.msra.mxu0 0.0
        %426 = vmatprep.subr.mxu0 0.0
        %427 = vmatpush1.msra.mxu0 0.0
        %428 = vmatprep.subr.mxu0 0.0
        %429 = vmatpush1.msra.mxu0 0.0
        %430 = vmatprep.subr.mxu0 0.0
        %431 = vmatpush1.msra.mxu0 0.0
        %432 = vmatprep.subr.mxu0 0.0
        %433 = vmatpush1.msra.mxu0 0.0
        %434 = vmatprep.subr.mxu0 0.0
        %435 = vmatpush1.msra.mxu0 0.0
        %436 = vmatprep.subr.mxu0 0.0
        %437 = vmatpush1.msra.mxu0 0.0
        %438 = vmatprep.subr.mxu0 0.0
        %439 = vmatpush1.msra.mxu0 0.0
        %440 = vmatprep.subr.mxu0 0.0
        %441 = vmatpush1.msra.mxu0 0.0
        %442 = vmatprep.subr.mxu0 0.0
        %443 = vmatpush1.msra.mxu0 0.0
        %444 = vmatprep.subr.mxu0 0.0
        %445 = vmatpush1.msra.mxu0 0.0
        %446 = vmatprep.mubr.f32.mxu0 0.0
        %447 = vmatmul.mubr.f32.gmra.mrb[0].mxu0 %v371
        %v448 = vpop.f32.mrb[0].mxu0
        %v449 = vadd.f32 %v367, %v448
        %v450 = vpop.f32.mrb[0].mxu0
        %451 = vmatprep.mubr.f32.mxu0 0.0
        %452 = vmatmul.mubr.f32.gmra.mrb[0].mxu0 %v374
        %v453 = vpop.f32.mrb[0].mxu0
        %v454 = vadd.f32 %v367, %v453
        %v455 = vpop.f32.mrb[0].mxu0
        %456 = vmatprep.mubr.f32.mxu0 0.0
        %457 = vmatmul.mubr.f32.gmra.mrb[0].mxu0 %v377
        %v458 = vpop.f32.mrb[0].mxu0
        %v459 = vadd.f32 %v367, %v458
        %v460 = vpop.f32.mrb[0].mxu0
        %461 = vmatprep.mubr.f32.mxu0 0.0
        %462 = vmatmul.mubr.f32.gmra.mrb[0].mxu0 %v380
        %v463 = vpop.f32.mrb[0].mxu0
        %v464 = vadd.f32 %v367, %v463
        %v465 = vpop.f32.mrb[0].mxu0
        %466 = vdwg.mxu0
        %467 = vst [vmem:[%s330] sm:$0xff] %v449
        %468 = vst [vmem:[%s330 + $0x8] sm:$0xff] %v454
        %469 = vst [vmem:[%s330 + $0x10] sm:$0xff] %v459
        %470 = vst [vmem:[%s330 + $0x18] sm:$0xff] %v464
        %v471 = vld [vmem:[%s3] sm:$0xff]
        %v472 = vld [vmem:[%s3 + $0x8] sm:$0xff]
        %v473 = vld [vmem:[%s3 + $0x10] sm:$0xff]
        %v474 = vld [vmem:[%s3 + $0x18] sm:$0xff]
        %v475 = vld [vmem:[%s4] sm:$0x1]
        %v477 = vlaneseq
        %v478 = vshrl.u32 %v477, 7
        %v479 = vsub.s32 0, %v478
        %v480 = vrot.slane %v475, %v479
        %482 = vmatprep.subr.mxu0 0.0
        %483 = vmatpush1.msra.mxu0 %v471
        %484 = vmatprep.subr.mxu0 0.0
        %485 = vmatpush1.msra.mxu0 %v472
        %486 = vmatprep.subr.mxu0 0.0
        %487 = vmatpush1.msra.mxu0 %v473
        %488 = vmatprep.subr.mxu0 0.0
        %489 = vmatpush1.msra.mxu0 %v474
        %490 = vmatprep.subr.mxu0 0.0
        %491 = vmatpush1.msra.mxu0 0.0
        %492 = vmatprep.subr.mxu0 0.0
        %493 = vmatpush1.msra.mxu0 0.0
        %494 = vmatprep.subr.mxu0 0.0
        %495 = vmatpush1.msra.mxu0 0.0
        %496 = vmatprep.subr.mxu0 0.0
        %497 = vmatpush1.msra.mxu0 0.0
        %498 = vmatprep.subr.mxu0 0.0
        %499 = vmatpush1.msra.mxu0 0.0
        %500 = vmatprep.subr.mxu0 0.0
        %501 = vmatpush1.msra.mxu0 0.0
        %502 = vmatprep.subr.mxu0 0.0
        %503 = vmatpush1.msra.mxu0 0.0
        %504 = vmatprep.subr.mxu0 0.0
        %505 = vmatpush1.msra.mxu0 0.0
        %506 = vmatprep.subr.mxu0 0.0
        %507 = vmatpush1.msra.mxu0 0.0
        %508 = vmatprep.subr.mxu0 0.0
        %509 = vmatpush1.msra.mxu0 0.0
        %510 = vmatprep.subr.mxu0 0.0
        %511 = vmatpush1.msra.mxu0 0.0
        %512 = vmatprep.subr.mxu0 0.0
        %513 = vmatpush1.msra.mxu0 0.0
        %514 = vmatprep.subr.mxu0 0.0
        %515 = vmatpush1.msra.mxu0 0.0
        %516 = vmatprep.subr.mxu0 0.0
        %517 = vmatpush1.msra.mxu0 0.0
        %518 = vmatprep.subr.mxu0 0.0
        %519 = vmatpush1.msra.mxu0 0.0
        %520 = vmatprep.subr.mxu0 0.0
        %521 = vmatpush1.msra.mxu0 0.0
        %522 = vmatprep.subr.mxu0 0.0
        %523 = vmatpush1.msra.mxu0 0.0
        %524 = vmatprep.subr.mxu0 0.0
        %525 = vmatpush1.msra.mxu0 0.0
        %526 = vmatprep.subr.mxu0 0.0
        %527 = vmatpush1.msra.mxu0 0.0
        %528 = vmatprep.subr.mxu0 0.0
        %529 = vmatpush1.msra.mxu0 0.0
        %530 = vmatprep.subr.mxu0 0.0
        %531 = vmatpush1.msra.mxu0 0.0
        %532 = vmatprep.subr.mxu0 0.0
        %533 = vmatpush1.msra.mxu0 0.0
        %534 = vmatprep.subr.mxu0 0.0
        %535 = vmatpush1.msra.mxu0 0.0
        %536 = vmatprep.subr.mxu0 0.0
        %537 = vmatpush1.msra.mxu0 0.0
        %538 = vmatprep.subr.mxu0 0.0
        %539 = vmatpush1.msra.mxu0 0.0
        %540 = vmatprep.subr.mxu0 0.0
        %541 = vmatpush1.msra.mxu0 0.0
        %542 = vmatprep.subr.mxu0 0.0
        %543 = vmatpush1.msra.mxu0 0.0
        %544 = vmatprep.subr.mxu0 0.0
        %545 = vmatpush1.msra.mxu0 0.0
        %546 = vmatprep.mubr.f32.mxu0 0.0
        %547 = vmatmul.mubr.f32.gmra.mrb[0].mxu0 %v371
        %v548 = vpop.f32.mrb[0].mxu0
        %v549 = vadd.f32 %v480, %v548
        %v550 = vpop.f32.mrb[0].mxu0
        %551 = vmatprep.mubr.f32.mxu0 0.0
        %552 = vmatmul.mubr.f32.gmra.mrb[0].mxu0 %v374
        %v553 = vpop.f32.mrb[0].mxu0
        %v554 = vadd.f32 %v480, %v553
        %v555 = vpop.f32.mrb[0].mxu0
        %556 = vmatprep.mubr.f32.mxu0 0.0
        %557 = vmatmul.mubr.f32.gmra.mrb[0].mxu0 %v377
        %v558 = vpop.f32.mrb[0].mxu0
        %v559 = vadd.f32 %v480, %v558
        %v560 = vpop.f32.mrb[0].mxu0
        %561 = vmatprep.mubr.f32.mxu0 0.0
        %562 = vmatmul.mubr.f32.gmra.mrb[0].mxu0 %v380
        %v563 = vpop.f32.mrb[0].mxu0
        %v564 = vadd.f32 %v480, %v563
        %v565 = vpop.f32.mrb[0].mxu0
        %566 = vdwg.mxu0
        %567 = vst [vmem:[%s337] sm:$0xff] %v549
        %568 = vst [vmem:[%s337 + $0x8] sm:$0xff] %v554
        %569 = vst [vmem:[%s337 + $0x10] sm:$0xff] %v559
        %570 = vst [vmem:[%s337 + $0x18] sm:$0xff] %v564
        %v571 = vld [vmem:[%s5] sm:$0xff]
        %v572 = vld [vmem:[%s5 + $0x8] sm:$0xff]
        %v573 = vld [vmem:[%s5 + $0x10] sm:$0xff]
        %v574 = vld [vmem:[%s5 + $0x18] sm:$0xff]
        %v575 = vld [vmem:[%s6] sm:$0x1]
        %v577 = vlaneseq
        %v578 = vshrl.u32 %v577, 7
        %v579 = vsub.s32 0, %v578
        %v580 = vrot.slane %v575, %v579
        %582 = vmatprep.subr.mxu0 0.0
        %583 = vmatpush1.msra.mxu0 %v571
        %584 = vmatprep.subr.mxu0 0.0
        %585 = vmatpush1.msra.mxu0 %v572
        %586 = vmatprep.subr.mxu0 0.0
        %587 = vmatpush1.msra.mxu0 %v573
        %588 = vmatprep.subr.mxu0 0.0
        %589 = vmatpush1.msra.mxu0 %v574
        %590 = vmatprep.subr.mxu0 0.0
        %591 = vmatpush1.msra.mxu0 0.0
        %592 = vmatprep.subr.mxu0 0.0
        %593 = vmatpush1.msra.mxu0 0.0
        %594 = vmatprep.subr.mxu0 0.0
        %595 = vmatpush1.msra.mxu0 0.0
        %596 = vmatprep.subr.mxu0 0.0
        %597 = vmatpush1.msra.mxu0 0.0
        %598 = vmatprep.subr.mxu0 0.0
        %599 = vmatpush1.msra.mxu0 0.0
        %600 = vmatprep.subr.mxu0 0.0
        %601 = vmatpush1.msra.mxu0 0.0
        %602 = vmatprep.subr.mxu0 0.0
        %603 = vmatpush1.msra.mxu0 0.0
        %604 = vmatprep.subr.mxu0 0.0
        %605 = vmatpush1.msra.mxu0 0.0
        %606 = vmatprep.subr.mxu0 0.0
        %607 = vmatpush1.msra.mxu0 0.0
        %608 = vmatprep.subr.mxu0 0.0
        %609 = vmatpush1.msra.mxu0 0.0
        %610 = vmatprep.subr.mxu0 0.0
        %611 = vmatpush1.msra.mxu0 0.0
        %612 = vmatprep.subr.mxu0 0.0
        %613 = vmatpush1.msra.mxu0 0.0
        %614 = vmatprep.subr.mxu0 0.0
        %615 = vmatpush1.msra.mxu0 0.0
        %616 = vmatprep.subr.mxu0 0.0
        %617 = vmatpush1.msra.mxu0 0.0
        %618 = vmatprep.subr.mxu0 0.0
        %619 = vmatpush1.msra.mxu0 0.0
        %620 = vmatprep.subr.mxu0 0.0
        %621 = vmatpush1.msra.mxu0 0.0
        %622 = vmatprep.subr.mxu0 0.0
        %623 = vmatpush1.msra.mxu0 0.0
        %624 = vmatprep.subr.mxu0 0.0
        %625 = vmatpush1.msra.mxu0 0.0
        %626 = vmatprep.subr.mxu0 0.0
        %627 = vmatpush1.msra.mxu0 0.0
        %628 = vmatprep.subr.mxu0 0.0
        %629 = vmatpush1.msra.mxu0 0.0
        %630 = vmatprep.subr.mxu0 0.0
        %631 = vmatpush1.msra.mxu0 0.0
        %632 = vmatprep.subr.mxu0 0.0
        %633 = vmatpush1.msra.mxu0 0.0
        %634 = vmatprep.subr.mxu0 0.0
        %635 = vmatpush1.msra.mxu0 0.0
        %636 = vmatprep.subr.mxu0 0.0
        %637 = vmatpush1.msra.mxu0 0.0
        %638 = vmatprep.subr.mxu0 0.0
        %639 = vmatpush1.msra.mxu0 0.0
        %640 = vmatprep.subr.mxu0 0.0
        %641 = vmatpush1.msra.mxu0 0.0
        %642 = vmatprep.subr.mxu0 0.0
        %643 = vmatpush1.msra.mxu0 0.0
        %644 = vmatprep.subr.mxu0 0.0
        %645 = vmatpush1.msra.mxu0 0.0
        %646 = vmatprep.mubr.f32.mxu0 0.0
        %647 = vmatmul.mubr.f32.gmra.mrb[0].mxu0 %v371
        %v648 = vpop.f32.mrb[0].mxu0
        %v649 = vadd.f32 %v580, %v648
        %v650 = vpop.f32.mrb[0].mxu0
        %651 = vmatprep.mubr.f32.mxu0 0.0
        %652 = vmatmul.mubr.f32.gmra.mrb[0].mxu0 %v374
        %v653 = vpop.f32.mrb[0].mxu0
        %v654 = vadd.f32 %v580, %v653
        %v655 = vpop.f32.mrb[0].mxu0
        %656 = vmatprep.mubr.f32.mxu0 0.0
        %657 = vmatmul.mubr.f32.gmra.mrb[0].mxu0 %v377
        %v658 = vpop.f32.mrb[0].mxu0
        %v659 = vadd.f32 %v580, %v658
        %v660 = vpop.f32.mrb[0].mxu0
        %661 = vmatprep.mubr.f32.mxu0 0.0
        %662 = vmatmul.mubr.f32.gmra.mrb[0].mxu0 %v380
        %v663 = vpop.f32.mrb[0].mxu0
        %v664 = vadd.f32 %v580, %v663
        %v665 = vpop.f32.mrb[0].mxu0
        %666 = vdwg.mxu0
        %667 = vst [vmem:[%s344] sm:$0xff] %v649
        %668 = vst [vmem:[%s344 + $0x8] sm:$0xff] %v654
        %669 = vst [vmem:[%s344 + $0x10] sm:$0xff] %v659
        %670 = vst [vmem:[%s344 + $0x18] sm:$0xff] %v664
        %s671 = sand.u32 %s187, 1
        %s672 = scalar_lea.sflag [#allocation3], %s671
        %s673 = sand.u32 %s187, 1
        %s674 = smul.addr %s673, 32
        %s675 = scalar_lea.vmem [#allocation2], %s674
        %s676 = sand.u32 %s27, 1
        %s677 = scalar_lea.sflag [#allocation5], %s676
        %s678 = sand.u32 %s213, 1
        %s679 = smul.addr %s678, 32
        %s680 = scalar_lea.vmem [#allocation4], %s679
        %s681 = sand.u32 %s27, 1
        %s682 = scalar_lea.sflag [#allocation5], %s681
        %s683 = sand.u32 %s239, 1
        %s684 = smul.addr %s683, 32
        %s685 = scalar_lea.vmem [#allocation6], %s684
        // Predicated region
        $region49: #{tpu_custom_call.1} parent=47 // pred_check
          %p686 = pneg %p197
        $region50: #{tpu_custom_call.1} parent=47 // pred_check_branch
          %688 = sbr.rel (%p686) target = $region52
        $region51: #{tpu_custom_call.1} parent=47 // pred_region
          %s689 = smul.u32 4, %s27
          %s691 = ssub.s32 512, 512
          %692 = vsyncadd %s672, %s691
          %s693 = smul.addr %s689, 128
          %s694 = scalar_lea.hbm %s7, %s693
          %s695 = sshll.u32 %s675, 4
          %s696 = int_to_ptr.vmem [resolvable:$true] %s695
          %701 = dma.vmem_to_hbm [thread:$0]  %s696, 512, %s694, %s672, 128, 128, 8
        $region52: #{tpu_custom_call.1} parent=47 // pred_fallthru
          _
        // Predicated region
        $region53: #{tpu_custom_call.1} parent=47 // pred_check
          %p702 = pneg %p223
        $region54: #{tpu_custom_call.1} parent=47 // pred_check_branch
          %704 = sbr.rel (%p702) target = $region56
        $region55: #{tpu_custom_call.1} parent=47 // pred_region
          %s705 = smul.u32 4, %s27
          %s707 = ssub.s32 512, 512
          %708 = vsyncadd %s677, %s707
          %s709 = smul.addr %s705, 128
          %s710 = scalar_lea.hbm %s8, %s709
          %s711 = sshll.u32 %s680, 4
          %s712 = int_to_ptr.vmem [resolvable:$true] %s711
          %717 = dma.vmem_to_hbm [thread:$0]  %s712, 512, %s710, %s677, 128, 128, 8
        $region56: #{tpu_custom_call.1} parent=47 // pred_fallthru
          _
        // Predicated region
        $region57: #{tpu_custom_call.1} parent=47 // pred_check
          %p718 = pneg %p249
        $region58: #{tpu_custom_call.1} parent=47 // pred_check_branch
          %720 = sbr.rel (%p718) target = $region60
        $region59: #{tpu_custom_call.1} parent=47 // pred_region
          %s721 = smul.u32 4, %s27
          %s723 = ssub.s32 512, 512
          %724 = vsyncadd %s682, %s723
          %s725 = smul.addr %s721, 128
          %s726 = scalar_lea.hbm %s9, %s725
          %s727 = sshll.u32 %s685, 4
          %s728 = int_to_ptr.vmem [resolvable:$true] %s727
          %733 = dma.vmem_to_hbm [thread:$0]  %s728, 512, %s726, %s682, 128, 128, 8
        $region60: #{tpu_custom_call.1} parent=47 // pred_fallthru
          _
      $region48: #{tpu_custom_call.1} parent=5 // pred_fallthru
        _
      %p734 = scmp.le.s32.totalorder 2, %s22
      // Predicated region
      $region61: #{tpu_custom_call.1} parent=5 // pred_check
        %p735 = pneg %p734
      $region62: #{tpu_custom_call.1} parent=5 // pred_check_branch
        %737 = sbr.rel (%p735) target = $region64
      $region63: #{tpu_custom_call.1} parent=5 // pred_region
        %s738 = ssub.s32 %s22, 2
        // Predicated region
        $region65: #{tpu_custom_call.1} parent=63 // pred_check
          %p739 = pneg %p203
        $region66: #{tpu_custom_call.1} parent=63 // pred_check_branch
          %741 = sbr.rel (%p739) target = $region68
        $region67: #{tpu_custom_call.1} parent=63 // pred_region
          %s742 = sand.u32 %s188, 1
          %s743 = scalar_lea.sflag [#allocation3], %s742
          %s744 = sand.u32 %s188, 1
          %s745 = smul.addr %s744, 32
          %s746 = scalar_lea.vmem [#allocation2], %s745
          %747 = dma.done %s743, 512
        $region68: #{tpu_custom_call.1} parent=63 // pred_fallthru
          _
        // Predicated region
        $region69: #{tpu_custom_call.1} parent=63 // pred_check
          %p748 = pneg %p229
        $region70: #{tpu_custom_call.1} parent=63 // pred_check_branch
          %750 = sbr.rel (%p748) target = $region72
        $region71: #{tpu_custom_call.1} parent=63 // pred_region
          %s751 = sand.u32 %s28, 1
          %s752 = scalar_lea.sflag [#allocation5], %s751
          %s753 = sand.u32 %s214, 1
          %s754 = smul.addr %s753, 32
          %s755 = scalar_lea.vmem [#allocation4], %s754
          %756 = dma.done %s752, 512
        $region72: #{tpu_custom_call.1} parent=63 // pred_fallthru
          _
        // Predicated region
        $region73: #{tpu_custom_call.1} parent=63 // pred_check
          %p757 = pneg %p255
        $region74: #{tpu_custom_call.1} parent=63 // pred_check_branch
          %759 = sbr.rel (%p757) target = $region76
        $region75: #{tpu_custom_call.1} parent=63 // pred_region
          %s760 = sand.u32 %s28, 1
          %s761 = scalar_lea.sflag [#allocation5], %s760
          %s762 = sand.u32 %s240, 1
          %s763 = smul.addr %s762, 32
          %s764 = scalar_lea.vmem [#allocation6], %s763
          %765 = dma.done %s761, 512
        $region76: #{tpu_custom_call.1} parent=63 // pred_fallthru
          _
      $region64: #{tpu_custom_call.1} parent=5 // pred_fallthru
        _
    $region6: #{tpu_custom_call.1} parent=1 // loop_footer
      %s26 = sadd.s32 1, %s22
    $region7: #{tpu_custom_call.1} parent=1 // loop_footer_branch
      %21 = sbr.rel target = $region3
    $region8: #{tpu_custom_call.1} parent=1 // loop_exit
      _
    %766 = vsyncpa [#allocation3], 1
    %s767 = scalar_lea.sflag [#allocation3], 1
    %768 = vsyncpa %s767, 1
    %769 = vsyncpa [#allocation5], 1
    %s770 = scalar_lea.sflag [#allocation5], 1
    %771 = vsyncpa %s770, 1

</llo_original>
